<compile_context>
chip_gen: v5e
topology: v5e:2x2
jax: 0.10.0
libtpu: 0.0.40
codegen_flags: <defaults>
</compile_context>

<pallas_src>
import jax
import jax.numpy as jnp
from jax.experimental import pallas as pl
from jax.experimental.pallas import tpu as pltpu

HIDDEN_DIM = 32
NUM_LAYERS = 5          # conv1 + (NUM_LAYERS - 1) hidden GraphConvs
NUM_HIDDEN_CONVS = NUM_LAYERS - 1
IN_FEATS = 14
NUM_CLASSES = 2


def mutag_gnn_kernel(x_ref, adj_ref, pool_ref,
                     wc1_ref, b1_ref,
                     wch_ref, bh_ref,
                     wl1_ref, bl1_ref, wl2_ref, bl2_ref,
                     out_ref):
    H = HIDDEN_DIM
    x = x_ref[...]                     # (N, F)   f32
    adj_bf = adj_ref[...]              # (N, N)   bf16 (cast on host, exact 0/1)

    # ---- conv1: GraphConv(14 -> H) + ReLU, fused [W_root | W_nbr] matmul ----
    hw = jnp.dot(x, wc1_ref[...], preferred_element_type=jnp.float32)       # (N, 2H)
    agg = jnp.dot(adj_bf, hw[:, H:].astype(jnp.bfloat16),
                  preferred_element_type=jnp.float32)                        # (N, H)
    h = jnp.maximum(hw[:, :H] + agg + b1_ref[...], 0.0)

    # ---- hidden GraphConv(H -> H) + ReLU, statically unrolled ----
    for l in range(NUM_HIDDEN_CONVS):
        hw = jnp.dot(h, wch_ref[l], preferred_element_type=jnp.float32)      # (N, 2H)
        agg = jnp.dot(adj_bf, hw[:, H:].astype(jnp.bfloat16),
                      preferred_element_type=jnp.float32)
        h = jnp.maximum(hw[:, :H] + agg + bh_ref[l], 0.0)

    # ---- SumAggregation pooling over nodes per graph ----
    pooled = jnp.dot(pool_ref[...], h, preferred_element_type=jnp.float32)   # (G, H)

    # ---- lin1 + ReLU ----
    z = jnp.maximum(
        jnp.dot(pooled, wl1_ref[...], preferred_element_type=jnp.float32)
        + bl1_ref[...], 0.0)

    # ---- dropout: identity at inference time ----
    # TODO(synk): training-mode dropout (random mask) not implemented; eval semantics.

    # ---- lin2 + LogSoftmax(dim=1), 2-class closed form ----
    logits = (jnp.dot(z, wl2_ref[...], preferred_element_type=jnp.float32)
              + bl2_ref[...])                                                # (G, 2)
    l0 = logits[:, 0:1]
    l1 = logits[:, 1:2]
    d = l1 - l0
    # stable softplus(d) = log(1 + exp(d));  lse = logaddexp(l0, l1)
    softplus = jnp.maximum(d, 0.0) + jnp.log1p(jnp.exp(-jnp.abs(d)))
    lse = l0 + softplus
    out_ref[...] = logits - lse


def fuse_params(params):
    """Host-side fusion of root/neighbor projection weights into one matmul."""
    return {
        "wc1": jnp.concatenate([params["wr1"], params["wn1"]], axis=1),      # (14, 2H)
        "b1":  params["b1"],
        "wch": jnp.concatenate([params["wrh"], params["wnh"]], axis=2),      # (L, H, 2H)
        "bh":  params["bh"],
        "wl1": params["wl1"], "bl1": params["bl1"],
        "wl2": params["wl2"], "bl2": params["bl2"],
    }


def _pad_nodes(x, adj, pool, multiple=8):
    """Pad node dimension to a sublane multiple; pad nodes never affect output
    (their adjacency rows/cols and pooling columns are zero)."""
    n = x.shape[0]
    n_pad = (-n) % multiple
    if n_pad:
        x = jnp.pad(x, ((0, n_pad), (0, 0)))
        adj = jnp.pad(adj, ((0, n_pad), (0, n_pad)))
        pool = jnp.pad(pool, ((0, 0), (0, n_pad)))
    return x, adj, pool


def mutag_gnn_forward(x, adj, pool, fused):
    x, adj, pool = _pad_nodes(x, adj, pool)
    num_graphs = pool.shape[0]
    # Cast adjacency to bf16 on the host: 0/1 values are exact, the O(N^2)
    # operand moves at half width and feeds the MXU bf16 path directly.
    adj_bf = adj.astype(jnp.bfloat16)
    args = (x, adj_bf, pool,
            fused["wc1"], fused["b1"],
            fused["wch"], fused["bh"],
            fused["wl1"], fused["bl1"], fused["wl2"], fused["bl2"])
    vmem_spec = pl.BlockSpec(memory_space=pltpu.MemorySpace.VMEM)
    return pl.pallas_call(
        mutag_gnn_kernel,
        out_shape=jax.ShapeDtypeStruct((num_graphs, NUM_CLASSES), jnp.float32),
        in_specs=[vmem_spec] * len(args),
        out_specs=vmem_spec,
        compiler_params=pltpu.CompilerParams(vmem_limit_bytes=64 * 1024 * 1024),
    )(*args)


def mutag_gnn_reference(x, adj, pool, params):
    """Pure-JAX f32 reference (PyG GraphConv / SumAggregation semantics)."""
    h = jnp.maximum(x @ params["wr1"] + (adj @ x) @ params["wn1"] + params["b1"], 0.0)
    for l in range(NUM_HIDDEN_CONVS):
        h = jnp.maximum(h @ params["wrh"][l] + (adj @ h) @ params["wnh"][l]
                        + params["bh"][l], 0.0)
    pooled = pool @ h
    z = jnp.maximum(pooled @ params["wl1"] + params["bl1"], 0.0)
    logits = z @ params["wl2"] + params["bl2"]
    return jax.nn.log_softmax(logits, axis=1)


def init_params(key):
    ks = jax.random.split(key, 10)

    def w(k, shape, scale):
        return jax.random.uniform(k, shape, jnp.float32, -1.0, 1.0) * scale

    s1 = 1.0 / jnp.sqrt(IN_FEATS)
    sh = 1.0 / jnp.sqrt(HIDDEN_DIM)
    return {
        "wr1": w(ks[0], (IN_FEATS, HIDDEN_DIM), s1),
        "wn1": w(ks[1], (IN_FEATS, HIDDEN_DIM), s1),
        "b1":  w(ks[2], (1, HIDDEN_DIM), s1),
        "wrh": w(ks[3], (NUM_HIDDEN_CONVS, HIDDEN_DIM, HIDDEN_DIM), sh),
        "wnh": w(ks[4], (NUM_HIDDEN_CONVS, HIDDEN_DIM, HIDDEN_DIM), sh),
        "bh":  w(ks[5], (NUM_HIDDEN_CONVS, 1, HIDDEN_DIM), sh),
        "wl1": w(ks[6], (HIDDEN_DIM, HIDDEN_DIM), sh),
        "bl1": w(ks[7], (1, HIDDEN_DIM), sh),
        "wl2": w(ks[8], (HIDDEN_DIM, NUM_CLASSES), sh),
        "bl2": w(ks[9], (1, NUM_CLASSES), sh),
    }


def build_graph(key, num_nodes, num_graphs):
    """Two ring graphs (undirected edges stored in both directions, like MUTAG)."""
    nodes_per_graph = num_nodes // num_graphs
    src, dst = [], []
    for g in range(num_graphs):
        base = g * nodes_per_graph
        for i in range(nodes_per_graph):
            a = base + i
            b = base + (i + 1) % nodes_per_graph
            src += [a, b]
            dst += [b, a]
    edge_index = jnp.array([src, dst], dtype=jnp.int32)          # (2, E)
    batch = jnp.repeat(jnp.arange(num_graphs, dtype=jnp.int32), nodes_per_graph)

    # Dense adjacency A[t, s] = 1 for each edge s -> t (message flow src -> dst).
    adj = jnp.zeros((num_nodes, num_nodes), jnp.float32)
    adj = adj.at[edge_index[1], edge_index[0]].add(1.0)

    # Pooling matrix P[g, n] = 1 iff batch[n] == g.
    pool = (batch[None, :] == jnp.arange(num_graphs)[:, None]).astype(jnp.float32)

    x = jax.random.uniform(key, (num_nodes, IN_FEATS), jnp.float32)
    return x, adj, pool


if __name__ == "__main__":
    key = jax.random.PRNGKey(0)
    k_params, k_graph = jax.random.split(key)

    NUM_NODES = 16
    NUM_GRAPHS = 2

    params = init_params(k_params)
    fused = fuse_params(params)
    x, adj, pool = build_graph(k_graph, NUM_NODES, NUM_GRAPHS)

    out = mutag_gnn_forward(x, adj, pool, fused)
    out = jax.block_until_ready(out)

    assert out.shape == (NUM_GRAPHS, NUM_CLASSES)
    # log-softmax rows should sum (in prob space) to ~1
    assert bool(jnp.all(jnp.abs(jnp.sum(jnp.exp(out), axis=1) - 1.0) < 1e-4))
    # relaxed-tolerance check vs. f32 reference (kernel uses bf16 for the
    # adjacency aggregation path)
    ref = mutag_gnn_reference(x, adj, pool, params)
    assert bool(jnp.allclose(out, ref, atol=1e-1, rtol=1e-1))

    print("KERNEL_OK")
</pallas_src>

<mosaic_0001>
module attributes {stable_mosaic.version = 11 : i64} {
  func.func @mutag_gnn_kernel(%arg0: memref<16x14xf32, #tpu.memory_space<vmem>>, %arg1: memref<16x16xbf16, #tpu.memory_space<vmem>>, %arg2: memref<2x16xf32, #tpu.memory_space<vmem>>, %arg3: memref<14x64xf32, #tpu.memory_space<vmem>>, %arg4: memref<1x32xf32, #tpu.memory_space<vmem>>, %arg5: memref<4x32x64xf32, #tpu.memory_space<vmem>>, %arg6: memref<4x1x32xf32, #tpu.memory_space<vmem>>, %arg7: memref<32x32xf32, #tpu.memory_space<vmem>>, %arg8: memref<1x32xf32, #tpu.memory_space<vmem>>, %arg9: memref<32x2xf32, #tpu.memory_space<vmem>>, %arg10: memref<1x2xf32, #tpu.memory_space<vmem>>, %arg11: memref<2x2xf32, #tpu.memory_space<vmem>>) attributes {dimension_semantics = [], scalar_prefetch = 0 : i64, scratch_operands = 0 : i64, tpu.core_type = #tpu.core_type<tc>} {
    %c0 = arith.constant 0 : index
    %c0_0 = arith.constant 0 : index
    %0 = vector.load %arg0[%c0, %c0_0] : memref<16x14xf32, #tpu.memory_space<vmem>>, vector<16x14xf32>
    %c0_1 = arith.constant 0 : index
    %c0_2 = arith.constant 0 : index
    %1 = vector.load %arg1[%c0_1, %c0_2] : memref<16x16xbf16, #tpu.memory_space<vmem>>, vector<16x16xbf16>
    %c0_3 = arith.constant 0 : index
    %c0_4 = arith.constant 0 : index
    %2 = vector.load %arg3[%c0_3, %c0_4] : memref<14x64xf32, #tpu.memory_space<vmem>>, vector<14x64xf32>
    %cst = arith.constant dense<0.000000e+00> : vector<16x64xf32>
    %3 = tpu.matmul %0, %2, %cst {dimension_numbers = #tpu.dot_dimension_numbers<[1], [0], [0], [1], [0, 0, 1, 1], [], []>} : vector<16x14xf32>, vector<14x64xf32>, vector<16x64xf32> -> vector<16x64xf32>
    %4 = vector.extract_strided_slice %3 {offsets = [0, 32], sizes = [16, 32], strides = [1, 1]} : vector<16x64xf32> to vector<16x32xf32>
    %5 = arith.truncf %4 : vector<16x32xf32> to vector<16x32xbf16>
    %cst_5 = arith.constant dense<0.000000e+00> : vector<16x32xf32>
    %6 = tpu.matmul %1, %5, %cst_5 {dimension_numbers = #tpu.dot_dimension_numbers<[1], [0], [0], [1], [0, 0, 1, 1], [], []>} : vector<16x16xbf16>, vector<16x32xbf16>, vector<16x32xf32> -> vector<16x32xf32>
    %7 = vector.extract_strided_slice %3 {offsets = [0, 0], sizes = [16, 32], strides = [1, 1]} : vector<16x64xf32> to vector<16x32xf32>
    %8 = arith.addf %7, %6 : vector<16x32xf32>
    %c0_6 = arith.constant 0 : index
    %c0_7 = arith.constant 0 : index
    %9 = vector.load %arg4[%c0_6, %c0_7] : memref<1x32xf32, #tpu.memory_space<vmem>>, vector<1x32xf32>
    %10 = vector.broadcast %9 : vector<1x32xf32> to vector<16x32xf32>
    %11 = arith.addf %8, %10 : vector<16x32xf32>
    %cst_8 = arith.constant 0.000000e+00 : f32
    %12 = vector.broadcast %cst_8 : f32 to vector<16x32xf32>
    %13 = arith.maximumf %11, %12 : vector<16x32xf32>
    %c0_9 = arith.constant 0 : index
    %c0_10 = arith.constant 0 : index
    %c0_11 = arith.constant 0 : index
    %14 = vector.load %arg5[%c0_9, %c0_10, %c0_11] : memref<4x32x64xf32, #tpu.memory_space<vmem>>, vector<1x32x64xf32>
    %15 = vector.shape_cast %14 : vector<1x32x64xf32> to vector<32x64xf32>
    %cst_12 = arith.constant dense<0.000000e+00> : vector<16x64xf32>
    %16 = tpu.matmul %13, %15, %cst_12 {dimension_numbers = #tpu.dot_dimension_numbers<[1], [0], [0], [1], [0, 0, 1, 1], [], []>} : vector<16x32xf32>, vector<32x64xf32>, vector<16x64xf32> -> vector<16x64xf32>
    %17 = vector.extract_strided_slice %16 {offsets = [0, 32], sizes = [16, 32], strides = [1, 1]} : vector<16x64xf32> to vector<16x32xf32>
    %18 = arith.truncf %17 : vector<16x32xf32> to vector<16x32xbf16>
    %cst_13 = arith.constant dense<0.000000e+00> : vector<16x32xf32>
    %19 = tpu.matmul %1, %18, %cst_13 {dimension_numbers = #tpu.dot_dimension_numbers<[1], [0], [0], [1], [0, 0, 1, 1], [], []>} : vector<16x16xbf16>, vector<16x32xbf16>, vector<16x32xf32> -> vector<16x32xf32>
    %20 = vector.extract_strided_slice %16 {offsets = [0, 0], sizes = [16, 32], strides = [1, 1]} : vector<16x64xf32> to vector<16x32xf32>
    %21 = arith.addf %20, %19 : vector<16x32xf32>
    %c0_14 = arith.constant 0 : index
    %c0_15 = arith.constant 0 : index
    %c0_16 = arith.constant 0 : index
    %22 = vector.load %arg6[%c0_14, %c0_15, %c0_16] : memref<4x1x32xf32, #tpu.memory_space<vmem>>, vector<1x1x32xf32>
    %23 = vector.shape_cast %22 : vector<1x1x32xf32> to vector<1x32xf32>
    %24 = vector.broadcast %23 : vector<1x32xf32> to vector<16x32xf32>
    %25 = arith.addf %21, %24 : vector<16x32xf32>
    %cst_17 = arith.constant 0.000000e+00 : f32
    %26 = vector.broadcast %cst_17 : f32 to vector<16x32xf32>
    %27 = arith.maximumf %25, %26 : vector<16x32xf32>
    %c1 = arith.constant 1 : index
    %c0_18 = arith.constant 0 : index
    %c0_19 = arith.constant 0 : index
    %28 = vector.load %arg5[%c1, %c0_18, %c0_19] : memref<4x32x64xf32, #tpu.memory_space<vmem>>, vector<1x32x64xf32>
    %29 = vector.shape_cast %28 : vector<1x32x64xf32> to vector<32x64xf32>
    %cst_20 = arith.constant dense<0.000000e+00> : vector<16x64xf32>
    %30 = tpu.matmul %27, %29, %cst_20 {dimension_numbers = #tpu.dot_dimension_numbers<[1], [0], [0], [1], [0, 0, 1, 1], [], []>} : vector<16x32xf32>, vector<32x64xf32>, vector<16x64xf32> -> vector<16x64xf32>
    %31 = vector.extract_strided_slice %30 {offsets = [0, 32], sizes = [16, 32], strides = [1, 1]} : vector<16x64xf32> to vector<16x32xf32>
    %32 = arith.truncf %31 : vector<16x32xf32> to vector<16x32xbf16>
    %cst_21 = arith.constant dense<0.000000e+00> : vector<16x32xf32>
    %33 = tpu.matmul %1, %32, %cst_21 {dimension_numbers = #tpu.dot_dimension_numbers<[1], [0], [0], [1], [0, 0, 1, 1], [], []>} : vector<16x16xbf16>, vector<16x32xbf16>, vector<16x32xf32> -> vector<16x32xf32>
    %34 = vector.extract_strided_slice %30 {offsets = [0, 0], sizes = [16, 32], strides = [1, 1]} : vector<16x64xf32> to vector<16x32xf32>
    %35 = arith.addf %34, %33 : vector<16x32xf32>
    %c1_22 = arith.constant 1 : index
    %c0_23 = arith.constant 0 : index
    %c0_24 = arith.constant 0 : index
    %36 = vector.load %arg6[%c1_22, %c0_23, %c0_24] : memref<4x1x32xf32, #tpu.memory_space<vmem>>, vector<1x1x32xf32>
    %37 = vector.shape_cast %36 : vector<1x1x32xf32> to vector<1x32xf32>
    %38 = vector.broadcast %37 : vector<1x32xf32> to vector<16x32xf32>
    %39 = arith.addf %35, %38 : vector<16x32xf32>
    %cst_25 = arith.constant 0.000000e+00 : f32
    %40 = vector.broadcast %cst_25 : f32 to vector<16x32xf32>
    %41 = arith.maximumf %39, %40 : vector<16x32xf32>
    %c2 = arith.constant 2 : index
    %c0_26 = arith.constant 0 : index
    %c0_27 = arith.constant 0 : index
    %42 = vector.load %arg5[%c2, %c0_26, %c0_27] : memref<4x32x64xf32, #tpu.memory_space<vmem>>, vector<1x32x64xf32>
    %43 = vector.shape_cast %42 : vector<1x32x64xf32> to vector<32x64xf32>
    %cst_28 = arith.constant dense<0.000000e+00> : vector<16x64xf32>
    %44 = tpu.matmul %41, %43, %cst_28 {dimension_numbers = #tpu.dot_dimension_numbers<[1], [0], [0], [1], [0, 0, 1, 1], [], []>} : vector<16x32xf32>, vector<32x64xf32>, vector<16x64xf32> -> vector<16x64xf32>
    %45 = vector.extract_strided_slice %44 {offsets = [0, 32], sizes = [16, 32], strides = [1, 1]} : vector<16x64xf32> to vector<16x32xf32>
    %46 = arith.truncf %45 : vector<16x32xf32> to vector<16x32xbf16>
    %cst_29 = arith.constant dense<0.000000e+00> : vector<16x32xf32>
    %47 = tpu.matmul %1, %46, %cst_29 {dimension_numbers = #tpu.dot_dimension_numbers<[1], [0], [0], [1], [0, 0, 1, 1], [], []>} : vector<16x16xbf16>, vector<16x32xbf16>, vector<16x32xf32> -> vector<16x32xf32>
    %48 = vector.extract_strided_slice %44 {offsets = [0, 0], sizes = [16, 32], strides = [1, 1]} : vector<16x64xf32> to vector<16x32xf32>
    %49 = arith.addf %48, %47 : vector<16x32xf32>
    %c2_30 = arith.constant 2 : index
    %c0_31 = arith.constant 0 : index
    %c0_32 = arith.constant 0 : index
    %50 = vector.load %arg6[%c2_30, %c0_31, %c0_32] : memref<4x1x32xf32, #tpu.memory_space<vmem>>, vector<1x1x32xf32>
    %51 = vector.shape_cast %50 : vector<1x1x32xf32> to vector<1x32xf32>
    %52 = vector.broadcast %51 : vector<1x32xf32> to vector<16x32xf32>
    %53 = arith.addf %49, %52 : vector<16x32xf32>
    %cst_33 = arith.constant 0.000000e+00 : f32
    %54 = vector.broadcast %cst_33 : f32 to vector<16x32xf32>
    %55 = arith.maximumf %53, %54 : vector<16x32xf32>
    %c3 = arith.constant 3 : index
    %c0_34 = arith.constant 0 : index
    %c0_35 = arith.constant 0 : index
    %56 = vector.load %arg5[%c3, %c0_34, %c0_35] : memref<4x32x64xf32, #tpu.memory_space<vmem>>, vector<1x32x64xf32>
    %57 = vector.shape_cast %56 : vector<1x32x64xf32> to vector<32x64xf32>
    %cst_36 = arith.constant dense<0.000000e+00> : vector<16x64xf32>
    %58 = tpu.matmul %55, %57, %cst_36 {dimension_numbers = #tpu.dot_dimension_numbers<[1], [0], [0], [1], [0, 0, 1, 1], [], []>} : vector<16x32xf32>, vector<32x64xf32>, vector<16x64xf32> -> vector<16x64xf32>
    %59 = vector.extract_strided_slice %58 {offsets = [0, 32], sizes = [16, 32], strides = [1, 1]} : vector<16x64xf32> to vector<16x32xf32>
    %60 = arith.truncf %59 : vector<16x32xf32> to vector<16x32xbf16>
    %cst_37 = arith.constant dense<0.000000e+00> : vector<16x32xf32>
    %61 = tpu.matmul %1, %60, %cst_37 {dimension_numbers = #tpu.dot_dimension_numbers<[1], [0], [0], [1], [0, 0, 1, 1], [], []>} : vector<16x16xbf16>, vector<16x32xbf16>, vector<16x32xf32> -> vector<16x32xf32>
    %62 = vector.extract_strided_slice %58 {offsets = [0, 0], sizes = [16, 32], strides = [1, 1]} : vector<16x64xf32> to vector<16x32xf32>
    %63 = arith.addf %62, %61 : vector<16x32xf32>
    %c3_38 = arith.constant 3 : index
    %c0_39 = arith.constant 0 : index
    %c0_40 = arith.constant 0 : index
    %64 = vector.load %arg6[%c3_38, %c0_39, %c0_40] : memref<4x1x32xf32, #tpu.memory_space<vmem>>, vector<1x1x32xf32>
    %65 = vector.shape_cast %64 : vector<1x1x32xf32> to vector<1x32xf32>
    %66 = vector.broadcast %65 : vector<1x32xf32> to vector<16x32xf32>
    %67 = arith.addf %63, %66 : vector<16x32xf32>
    %cst_41 = arith.constant 0.000000e+00 : f32
    %68 = vector.broadcast %cst_41 : f32 to vector<16x32xf32>
    %69 = arith.maximumf %67, %68 : vector<16x32xf32>
    %c0_42 = arith.constant 0 : index
    %c0_43 = arith.constant 0 : index
    %70 = vector.load %arg2[%c0_42, %c0_43] : memref<2x16xf32, #tpu.memory_space<vmem>>, vector<2x16xf32>
    %cst_44 = arith.constant dense<0.000000e+00> : vector<2x32xf32>
    %71 = tpu.matmul %70, %69, %cst_44 {dimension_numbers = #tpu.dot_dimension_numbers<[1], [0], [0], [1], [0, 0, 1, 1], [], []>} : vector<2x16xf32>, vector<16x32xf32>, vector<2x32xf32> -> vector<2x32xf32>
    %c0_45 = arith.constant 0 : index
    %c0_46 = arith.constant 0 : index
    %72 = vector.load %arg7[%c0_45, %c0_46] : memref<32x32xf32, #tpu.memory_space<vmem>>, vector<32x32xf32>
    %cst_47 = arith.constant dense<0.000000e+00> : vector<2x32xf32>
    %73 = tpu.matmul %71, %72, %cst_47 {dimension_numbers = #tpu.dot_dimension_numbers<[1], [0], [0], [1], [0, 0, 1, 1], [], []>} : vector<2x32xf32>, vector<32x32xf32>, vector<2x32xf32> -> vector<2x32xf32>
    %c0_48 = arith.constant 0 : index
    %c0_49 = arith.constant 0 : index
    %74 = vector.load %arg8[%c0_48, %c0_49] : memref<1x32xf32, #tpu.memory_space<vmem>>, vector<1x32xf32>
    %75 = vector.broadcast %74 : vector<1x32xf32> to vector<2x32xf32>
    %76 = arith.addf %73, %75 : vector<2x32xf32>
    %cst_50 = arith.constant 0.000000e+00 : f32
    %77 = vector.broadcast %cst_50 : f32 to vector<2x32xf32>
    %78 = arith.maximumf %76, %77 : vector<2x32xf32>
    %c0_51 = arith.constant 0 : index
    %c0_52 = arith.constant 0 : index
    %79 = vector.load %arg9[%c0_51, %c0_52] : memref<32x2xf32, #tpu.memory_space<vmem>>, vector<32x2xf32>
    %cst_53 = arith.constant dense<0.000000e+00> : vector<2x2xf32>
    %80 = tpu.matmul %78, %79, %cst_53 {dimension_numbers = #tpu.dot_dimension_numbers<[1], [0], [0], [1], [0, 0, 1, 1], [], []>} : vector<2x32xf32>, vector<32x2xf32>, vector<2x2xf32> -> vector<2x2xf32>
    %c0_54 = arith.constant 0 : index
    %c0_55 = arith.constant 0 : index
    %81 = vector.load %arg10[%c0_54, %c0_55] : memref<1x2xf32, #tpu.memory_space<vmem>>, vector<1x2xf32>
    %82 = vector.broadcast %81 : vector<1x2xf32> to vector<2x2xf32>
    %83 = arith.addf %80, %82 : vector<2x2xf32>
    %84 = vector.extract_strided_slice %83 {offsets = [0, 0], sizes = [2, 1], strides = [1, 1]} : vector<2x2xf32> to vector<2x1xf32>
    %85 = vector.extract_strided_slice %83 {offsets = [0, 1], sizes = [2, 1], strides = [1, 1]} : vector<2x2xf32> to vector<2x1xf32>
    %86 = arith.subf %85, %84 : vector<2x1xf32>
    %cst_56 = arith.constant 0.000000e+00 : f32
    %87 = vector.broadcast %cst_56 : f32 to vector<2x1xf32>
    %88 = arith.maximumf %86, %87 : vector<2x1xf32>
    %89 = math.absf %86 : vector<2x1xf32>
    %cst_57 = arith.constant 0.000000e+00 : f32
    %90 = vector.broadcast %cst_57 : f32 to vector<2x1xf32>
    %91 = arith.subf %90, %89 : vector<2x1xf32>
    %92 = math.exp %91 : vector<2x1xf32>
    %93 = math.log1p %92 : vector<2x1xf32>
    %94 = arith.addf %88, %93 : vector<2x1xf32>
    %95 = arith.addf %84, %94 : vector<2x1xf32>
    %96 = vector.broadcast %95 : vector<2x1xf32> to vector<2x2xf32>
    %97 = arith.subf %83, %96 : vector<2x2xf32>
    %c0_58 = arith.constant 0 : index
    %c0_59 = arith.constant 0 : index
    %98 = vector.load %arg11[%c0_58, %c0_59] : memref<2x2xf32, #tpu.memory_space<vmem>>, vector<2x2xf32>
    tpu.vector_store %arg11[%c0_58, %c0_59], %97 {strides = array<i32>} : memref<2x2xf32, #tpu.memory_space<vmem>>, vector<2x2xf32>,
    return
  }
}

</mosaic_0001>

<llo_original>
// kernel: tpu_custom_call.1
$region0: #{tpu_custom_call.1}
  #allocation0 [shape = 'u32[]', space=smem, size = 0x4, offset = 0x4, fixed_abs, tag = 'smem constant byte address 0x4 - core index']
  #allocation1 [shape = 'u32[72,128]{1,0:T(1,128)}', space=vmem, size = 0x9000, scoped, tag = 'internal scratch']
  %s0 = inlined_call_operand.hbm [shape: f32[16,14], index: 0, kind: input, shape index: {}]
  %s1 = inlined_call_operand.hbm [shape: bf16[16,16], index: 1, kind: input, shape index: {}]
  %s2 = inlined_call_operand.vmem [shape: f32[2,16], index: 2, kind: input, shape index: {}]
  %s3 = inlined_call_operand.hbm [shape: f32[14,64], index: 3, kind: input, shape index: {}]
  %s4 = inlined_call_operand.vmem [shape: f32[1,32], index: 4, kind: input, shape index: {}]
  %s5 = inlined_call_operand.hbm [shape: f32[4,32,64], index: 5, kind: input, shape index: {}]
  %s6 = inlined_call_operand.hbm [shape: f32[4,1,32], index: 6, kind: input, shape index: {}]
  %s7 = inlined_call_operand.vmem [shape: f32[32,32], index: 7, kind: input, shape index: {}]
  %s8 = inlined_call_operand.vmem [shape: f32[1,32], index: 8, kind: input, shape index: {}]
  %s9 = inlined_call_operand.vmem [shape: f32[32,2], index: 9, kind: input, shape index: {}]
  %s10 = inlined_call_operand.vmem [shape: f32[1,2], index: 10, kind: input, shape index: {}]
  %s11 = inlined_call_operand.hbm [shape: f32[2,2], index: 11, kind: output, shape index: {}]
  %s12 = sld [smem:[#allocation0]]
  $region74: #{tpu_custom_call.1} parent=0
    _
  %s14 = ssub.s32 1, %s12
  %s15 = scalar_select 0, %s14, %s12
  $region1: #{tpu_custom_call.1} parent=0
    #allocation2 [shape = 'u8[8192]{0}', space=vmem, size = 0x2000, scoped, tag = 'input window, operand 0, single buffered']
    #allocation3 [shape = 's32[1]{0}', space=sflag, size = 0x4, scoped, tag = 'scoped memory for tpu_custom_call.1']
    #allocation4 [shape = 's32[1]{0}', space=sflag, size = 0x4, scoped, tag = 'scoped memory for tpu_custom_call.1']
    #allocation5 [shape = 'u8[4096]{0}', space=vmem, size = 0x1000, scoped, tag = 'input window, operand 1, single buffered']
    #allocation6 [shape = 's32[1]{0}', space=sflag, size = 0x4, scoped, tag = 'scoped memory for tpu_custom_call.1']
    #allocation7 [shape = 'u8[8192]{0}', space=vmem, size = 0x2000, scoped, tag = 'input window, operand 3, single buffered']
    #allocation8 [shape = 'u8[65536]{0}', space=vmem, size = 0x10000, scoped, tag = 'input window, operand 5, single buffered']
    #allocation9 [shape = 's32[1]{0}', space=sflag, size = 0x4, scoped, tag = 'scoped memory for tpu_custom_call.1']
    #allocation10 [shape = 'u8[2048]{0}', space=vmem, size = 0x800, scoped, tag = 'input window, operand 6, single buffered']
    #allocation11 [shape = 'u8[1024]{0}', space=vmem, size = 0x400, scoped, tag = 'output window, operand 0, single buffered']
    %16 = vsyncpa [#allocation3], 0
    %17 = vsyncpa [#allocation6], 0
    %18 = vsyncpa [#allocation9], 0
    %19 = vsyncpa [#allocation4], 0
    // Predicated region
    $region2: #{tpu_custom_call.1} parent=1 // pred_check
      _
    $region3: #{tpu_custom_call.1} parent=1 // pred_check_branch
      %21 = sbr.rel (0) target = $region5
    $region4: #{tpu_custom_call.1} parent=1 // pred_region
      %23 = vsyncadd [#allocation3], 0
      %s24 = sshll.u32 %s0, 4
      %s25 = int_to_ptr.hbm [resolvable:$true] %s24
      %s26 = sshll.u32 [#allocation2], 4
      %s27 = int_to_ptr.vmem [resolvable:$true] %s26
      %32 = dma.hbm_to_vmem [thread:$0]  %s25, 256, %s27, [#allocation3], 128, 128, 8
    $region5: #{tpu_custom_call.1} parent=1 // pred_fallthru
      _
    // Predicated region
    $region6: #{tpu_custom_call.1} parent=1 // pred_check
      _
    $region7: #{tpu_custom_call.1} parent=1 // pred_check_branch
      %34 = sbr.rel (0) target = $region9
    $region8: #{tpu_custom_call.1} parent=1 // pred_region
      %36 = vsyncadd [#allocation6], 0
      %s37 = sshll.u32 %s1, 4
      %s38 = int_to_ptr.hbm [resolvable:$true] %s37
      %s39 = sshll.u32 [#allocation5], 4
      %s40 = int_to_ptr.vmem [resolvable:$true] %s39
      %45 = dma.hbm_to_vmem [thread:$0]  %s38, 128, %s40, [#allocation6], 64, 64, 4
    $region9: #{tpu_custom_call.1} parent=1 // pred_fallthru
      _
    // Predicated region
    $region10: #{tpu_custom_call.1} parent=1 // pred_check
      _
    $region11: #{tpu_custom_call.1} parent=1 // pred_check_branch
      %47 = sbr.rel (0) target = $region13
    $region12: #{tpu_custom_call.1} parent=1 // pred_region
      _
    $region13: #{tpu_custom_call.1} parent=1 // pred_fallthru
      _
    // Predicated region
    $region14: #{tpu_custom_call.1} parent=1 // pred_check
      _
    $region15: #{tpu_custom_call.1} parent=1 // pred_check_branch
      %49 = sbr.rel (0) target = $region17
    $region16: #{tpu_custom_call.1} parent=1 // pred_region
      %51 = vsyncadd [#allocation6], 0
      %s52 = sshll.u32 %s3, 4
      %s53 = int_to_ptr.hbm [resolvable:$true] %s52
      %s54 = sshll.u32 [#allocation7], 4
      %s55 = int_to_ptr.vmem [resolvable:$true] %s54
      %60 = dma.hbm_to_vmem [thread:$0]  %s53, 256, %s55, [#allocation6], 128, 128, 8
    $region17: #{tpu_custom_call.1} parent=1 // pred_fallthru
      _
    // Predicated region
    $region18: #{tpu_custom_call.1} parent=1 // pred_check
      _
    $region19: #{tpu_custom_call.1} parent=1 // pred_check_branch
      %62 = sbr.rel (0) target = $region21
    $region20: #{tpu_custom_call.1} parent=1 // pred_region
      _
    $region21: #{tpu_custom_call.1} parent=1 // pred_fallthru
      _
    // Predicated region
    $region22: #{tpu_custom_call.1} parent=1 // pred_check
      _
    $region23: #{tpu_custom_call.1} parent=1 // pred_check_branch
      %64 = sbr.rel (0) target = $region25
    $region24: #{tpu_custom_call.1} parent=1 // pred_region
      %66 = vsyncadd [#allocation9], 0
      %s67 = sshll.u32 %s5, 4
      %s68 = int_to_ptr.hbm [resolvable:$true] %s67
      %s69 = sshll.u32 [#allocation8], 4
      %s70 = int_to_ptr.vmem [resolvable:$true] %s69
      %75 = dma.hbm_to_vmem [thread:$0]  %s68, 2048, %s70, [#allocation9], 128, 128, 8
    $region25: #{tpu_custom_call.1} parent=1 // pred_fallthru
      _
    // Predicated region
    $region26: #{tpu_custom_call.1} parent=1 // pred_check
      _
    $region27: #{tpu_custom_call.1} parent=1 // pred_check_branch
      %77 = sbr.rel (0) target = $region29
    $region28: #{tpu_custom_call.1} parent=1 // pred_region
      %79 = vsyncadd [#allocation9], 0
      %s80 = sshll.u32 %s6, 4
      %s81 = int_to_ptr.hbm [resolvable:$true] %s80
      %s82 = sshll.u32 [#allocation10], 4
      %s83 = int_to_ptr.vmem [resolvable:$true] %s82
      %88 = dma.hbm_to_vmem [thread:$0]  %s81, 64, %s83, [#allocation9], 16, 16, 1
    $region29: #{tpu_custom_call.1} parent=1 // pred_fallthru
      _
    // Predicated region
    $region30: #{tpu_custom_call.1} parent=1 // pred_check
      _
    $region31: #{tpu_custom_call.1} parent=1 // pred_check_branch
      %90 = sbr.rel (0) target = $region33
    $region32: #{tpu_custom_call.1} parent=1 // pred_region
      _
    $region33: #{tpu_custom_call.1} parent=1 // pred_fallthru
      _
    // Predicated region
    $region34: #{tpu_custom_call.1} parent=1 // pred_check
      _
    $region35: #{tpu_custom_call.1} parent=1 // pred_check_branch
      %92 = sbr.rel (0) target = $region37
    $region36: #{tpu_custom_call.1} parent=1 // pred_region
      _
    $region37: #{tpu_custom_call.1} parent=1 // pred_fallthru
      _
    // Predicated region
    $region38: #{tpu_custom_call.1} parent=1 // pred_check
      _
    $region39: #{tpu_custom_call.1} parent=1 // pred_check_branch
      %94 = sbr.rel (0) target = $region41
    $region40: #{tpu_custom_call.1} parent=1 // pred_region
      _
    $region41: #{tpu_custom_call.1} parent=1 // pred_fallthru
      _
    // Predicated region
    $region42: #{tpu_custom_call.1} parent=1 // pred_check
      _
    $region43: #{tpu_custom_call.1} parent=1 // pred_check_branch
      %96 = sbr.rel (0) target = $region45
    $region44: #{tpu_custom_call.1} parent=1 // pred_region
      _
    $region45: #{tpu_custom_call.1} parent=1 // pred_fallthru
      _
    // Predicated region
    $region46: #{tpu_custom_call.1} parent=1 // pred_check
      _
    $region47: #{tpu_custom_call.1} parent=1 // pred_check_branch
      %98 = sbr.rel (0) target = $region49
    $region48: #{tpu_custom_call.1} parent=1 // pred_region
      %100 = dma.done [#allocation3], 256
    $region49: #{tpu_custom_call.1} parent=1 // pred_fallthru
      _
    // Predicated region
    $region50: #{tpu_custom_call.1} parent=1 // pred_check
      _
    $region51: #{tpu_custom_call.1} parent=1 // pred_check_branch
      %102 = sbr.rel (0) target = $region53
    $region52: #{tpu_custom_call.1} parent=1 // pred_region
      %104 = dma.done [#allocation6], 128
    $region53: #{tpu_custom_call.1} parent=1 // pred_fallthru
      _
    // Predicated region
    $region54: #{tpu_custom_call.1} parent=1 // pred_check
      _
    $region55: #{tpu_custom_call.1} parent=1 // pred_check_branch
      %106 = sbr.rel (0) target = $region57
    $region56: #{tpu_custom_call.1} parent=1 // pred_region
      %108 = dma.done [#allocation6], 256
    $region57: #{tpu_custom_call.1} parent=1 // pred_fallthru
      _
    // Predicated region
    $region58: #{tpu_custom_call.1} parent=1 // pred_check
      _
    $region59: #{tpu_custom_call.1} parent=1 // pred_check_branch
      %110 = sbr.rel (0) target = $region61
    $region60: #{tpu_custom_call.1} parent=1 // pred_region
      %112 = dma.done [#allocation9], 2048
    $region61: #{tpu_custom_call.1} parent=1 // pred_fallthru
      _
    // Predicated region
    $region62: #{tpu_custom_call.1} parent=1 // pred_check
      _
    $region63: #{tpu_custom_call.1} parent=1 // pred_check_branch
      %114 = sbr.rel (0) target = $region65
    $region64: #{tpu_custom_call.1} parent=1 // pred_region
      %116 = dma.done [#allocation9], 64
    $region65: #{tpu_custom_call.1} parent=1 // pred_fallthru
      _
    %v118 = vld [vmem:[#allocation2] sm:$0xff]
    %v119 = vld [vmem:[#allocation2 + $0x8] sm:$0xff]
    %v120 = vld [vmem:[#allocation5] sm:$0xf]
    %v121 = vld [vmem:[#allocation5 + $0x4] sm:$0xf]
    %v122 = vld [vmem:[#allocation7] sm:$0xff]
    %v123 = vld [vmem:[#allocation7 + $0x8] sm:$0x3f]
    %vm124 = vcmask 113664
    %v126 = vsel %vm124, %v118, 0
    %v129 = vsel %vm124, %v119, 0
    %vm131 = vcmask 1045504
    %v133 = vsel %vm131, %v123, 0
    %135 = vmatpush.msra.mxu0 0.0
    %136 = vmatpush.msra.mxu0 0.0
    %137 = vmatpush.msra.mxu0 0.0
    %138 = vmatpush.msra.mxu0 0.0
    %139 = vmatpush.msra.mxu0 0.0
    %140 = vmatpush.msra.mxu0 0.0
    %141 = vmatpush.msra.mxu0 0.0
    %142 = vmatpush.msra.mxu0 0.0
    %143 = vmatpush.msra.mxu0 0.0
    %144 = vmatpush.msra.mxu0 0.0
    %145 = vmatpush.msra.mxu0 0.0
    %146 = vmatpush.msra.mxu0 0.0
    %147 = vmatpush.msra.mxu0 0.0
    %148 = vmatpush.msra.mxu0 0.0
    %149 = vmatpush.msra.mxu0 %v133
    %150 = vmatpush.msra.mxu0 %v122
    %151 = vmatmul.f32.gmra.mxu0 %v126
    %v152 = vpop.f32.mrf.mxu0
    %v153 = vadd.f32 0.0, %v152
    %154 = vmatmul.f32.gmra.mxu0 %v129
    %v155 = vpop.f32.mrf.mxu0
    %v156 = vadd.f32 0.0, %v155
    %157 = vdwg.mxu0
    %v158 = vpack.c.bf16 %v156, %v153
    %v161 = vunpack.c.l.b16 %v120
    %v162 = vunpack.c.l.b16 %v121
    %v163 = vpack.c.b16 %v162, %v161
    %165 = vrot.lane.b32.xlu0 %v158, 96
    %v166 = vpop.permute.xlu0 %165
    %vm168 = vcmask 130048
    %v170 = vsel %vm168, %v163, 0
    %172 = vmatpush.bf16.msra.mxu0 0
    %173 = vmatpush.bf16.msra.mxu0 0
    %174 = vmatpush.bf16.msra.mxu0 0
    %175 = vmatpush.bf16.msra.mxu0 0
    %176 = vmatpush.bf16.msra.mxu0 0
    %177 = vmatpush.bf16.msra.mxu0 0
    %178 = vmatpush.bf16.msra.mxu0 0
    %179 = vmatpush.bf16.msra.mxu0 %v166
    %180 = vmatmul.bf16.gmra.mxu0 %v170
    %v181 = vpop.f32.mrf.mxu0
    %v182 = vadd.f32 0.0, %v181
    %v183 = vpop.f32.mrf.mxu0
    %v184 = vadd.f32 0.0, %v183
    %185 = vdwg.mxu0
    %v186 = vadd.f32 %v153, %v182
    %v187 = vadd.f32 %v156, %v184
    %v188 = vld [vmem:[%s4] sm:$0x1]
    %v190 = vperm.slane %v188, 0
    %v192 = vadd.f32 %v186, %v190
    %v193 = vadd.f32 %v187, %v190
    %v194 = vmax.f32 %v192, 0.0
    %v195 = vmax.f32 %v193, 0.0
    %v196 = vld [vmem:[#allocation8] sm:$0xff]
    %v197 = vld [vmem:[#allocation8 + $0x8] sm:$0xff]
    %v198 = vld [vmem:[#allocation8 + $0x10] sm:$0xff]
    %v199 = vld [vmem:[#allocation8 + $0x18] sm:$0xff]
    %vm200 = vcmask 261120
    %v202 = vsel %vm200, %v194, 0
    %v205 = vsel %vm200, %v195, 0
    %207 = vmatpush.msra.mxu0 0.0
    %208 = vmatpush.msra.mxu0 0.0
    %209 = vmatpush.msra.mxu0 0.0
    %210 = vmatpush.msra.mxu0 0.0
    %211 = vmatpush.msra.mxu0 0.0
    %212 = vmatpush.msra.mxu0 0.0
    %213 = vmatpush.msra.mxu0 0.0
    %214 = vmatpush.msra.mxu0 0.0
    %215 = vmatpush.msra.mxu0 0.0
    %216 = vmatpush.msra.mxu0 0.0
    %217 = vmatpush.msra.mxu0 0.0
    %218 = vmatpush.msra.mxu0 0.0
    %219 = vmatpush.msra.mxu0 %v199
    %220 = vmatpush.msra.mxu0 %v198
    %221 = vmatpush.msra.mxu0 %v197
    %222 = vmatpush.msra.mxu0 %v196
    %223 = vmatmul.f32.gmra.mxu0 %v202
    %v224 = vpop.f32.mrf.mxu0
    %v225 = vadd.f32 0.0, %v224
    %226 = vmatmul.f32.gmra.mxu0 %v205
    %v227 = vpop.f32.mrf.mxu0
    %v228 = vadd.f32 0.0, %v227
    %229 = vdwg.mxu0
    %v230 = vpack.c.bf16 %v228, %v225
    %232 = vrot.lane.b32.xlu0 %v230, 96
    %v233 = vpop.permute.xlu0 %232
    %235 = vmatpush.bf16.msra.mxu0 0
    %236 = vmatpush.bf16.msra.mxu0 0
    %237 = vmatpush.bf16.msra.mxu0 0
    %238 = vmatpush.bf16.msra.mxu0 0
    %239 = vmatpush.bf16.msra.mxu0 0
    %240 = vmatpush.bf16.msra.mxu0 0
    %241 = vmatpush.bf16.msra.mxu0 0
    %242 = vmatpush.bf16.msra.mxu0 %v233
    %243 = vmatmul.bf16.gmra.mxu0 %v170
    %v244 = vpop.f32.mrf.mxu0
    %v245 = vadd.f32 0.0, %v244
    %v246 = vpop.f32.mrf.mxu0
    %v247 = vadd.f32 0.0, %v246
    %248 = vdwg.mxu0
    %v249 = vadd.f32 %v225, %v245
    %v250 = vadd.f32 %v228, %v247
    %v251 = vld [vmem:[#allocation10] sm:$0x1]
    %v253 = vperm.slane %v251, 0
    %v255 = vadd.f32 %v249, %v253
    %v256 = vadd.f32 %v250, %v253
    %v257 = vmax.f32 %v255, 0.0
    %v258 = vmax.f32 %v256, 0.0
    %s259 = scalar_lea.vmem [#allocation8], 32
    %v260 = vld [vmem:[%s259] sm:$0xff]
    %v261 = vld [vmem:[%s259 + $0x8] sm:$0xff]
    %v262 = vld [vmem:[%s259 + $0x10] sm:$0xff]
    %v263 = vld [vmem:[%s259 + $0x18] sm:$0xff]
    %v265 = vsel %vm200, %v257, 0
    %v268 = vsel %vm200, %v258, 0
    %270 = vmatpush.msra.mxu0 0.0
    %271 = vmatpush.msra.mxu0 0.0
    %272 = vmatpush.msra.mxu0 0.0
    %273 = vmatpush.msra.mxu0 0.0
    %274 = vmatpush.msra.mxu0 0.0
    %275 = vmatpush.msra.mxu0 0.0
    %276 = vmatpush.msra.mxu0 0.0
    %277 = vmatpush.msra.mxu0 0.0
    %278 = vmatpush.msra.mxu0 0.0
    %279 = vmatpush.msra.mxu0 0.0
    %280 = vmatpush.msra.mxu0 0.0
    %281 = vmatpush.msra.mxu0 0.0
    %282 = vmatpush.msra.mxu0 %v263
    %283 = vmatpush.msra.mxu0 %v262
    %284 = vmatpush.msra.mxu0 %v261
    %285 = vmatpush.msra.mxu0 %v260
    %286 = vmatmul.f32.gmra.mxu0 %v265
    %v287 = vpop.f32.mrf.mxu0
    %v288 = vadd.f32 0.0, %v287
    %289 = vmatmul.f32.gmra.mxu0 %v268
    %v290 = vpop.f32.mrf.mxu0
    %v291 = vadd.f32 0.0, %v290
    %292 = vdwg.mxu0
    %v293 = vpack.c.bf16 %v291, %v288
    %295 = vrot.lane.b32.xlu0 %v293, 96
    %v296 = vpop.permute.xlu0 %295
    %298 = vmatpush.bf16.msra.mxu0 0
    %299 = vmatpush.bf16.msra.mxu0 0
    %300 = vmatpush.bf16.msra.mxu0 0
    %301 = vmatpush.bf16.msra.mxu0 0
    %302 = vmatpush.bf16.msra.mxu0 0
    %303 = vmatpush.bf16.msra.mxu0 0
    %304 = vmatpush.bf16.msra.mxu0 0
    %305 = vmatpush.bf16.msra.mxu0 %v296
    %306 = vmatmul.bf16.gmra.mxu0 %v170
    %v307 = vpop.f32.mrf.mxu0
    %v308 = vadd.f32 0.0, %v307
    %v309 = vpop.f32.mrf.mxu0
    %v310 = vadd.f32 0.0, %v309
    %311 = vdwg.mxu0
    %v312 = vadd.f32 %v288, %v308
    %v313 = vadd.f32 %v291, %v310
    %s314 = scalar_lea.vmem [#allocation10], 1
    %v315 = vld [vmem:[%s314] sm:$0x1]
    %v317 = vperm.slane %v315, 0
    %v319 = vadd.f32 %v312, %v317
    %v320 = vadd.f32 %v313, %v317
    %v321 = vmax.f32 %v319, 0.0
    %v322 = vmax.f32 %v320, 0.0
    %s323 = scalar_lea.vmem [#allocation8], 64
    %v324 = vld [vmem:[%s323] sm:$0xff]
    %v325 = vld [vmem:[%s323 + $0x8] sm:$0xff]
    %v326 = vld [vmem:[%s323 + $0x10] sm:$0xff]
    %v327 = vld [vmem:[%s323 + $0x18] sm:$0xff]
    %v329 = vsel %vm200, %v321, 0
    %v332 = vsel %vm200, %v322, 0
    %334 = vmatpush.msra.mxu0 0.0
    %335 = vmatpush.msra.mxu0 0.0
    %336 = vmatpush.msra.mxu0 0.0
    %337 = vmatpush.msra.mxu0 0.0
    %338 = vmatpush.msra.mxu0 0.0
    %339 = vmatpush.msra.mxu0 0.0
    %340 = vmatpush.msra.mxu0 0.0
    %341 = vmatpush.msra.mxu0 0.0
    %342 = vmatpush.msra.mxu0 0.0
    %343 = vmatpush.msra.mxu0 0.0
    %344 = vmatpush.msra.mxu0 0.0
    %345 = vmatpush.msra.mxu0 0.0
    %346 = vmatpush.msra.mxu0 %v327
    %347 = vmatpush.msra.mxu0 %v326
    %348 = vmatpush.msra.mxu0 %v325
    %349 = vmatpush.msra.mxu0 %v324
    %350 = vmatmul.f32.gmra.mxu0 %v329
    %v351 = vpop.f32.mrf.mxu0
    %v352 = vadd.f32 0.0, %v351
    %353 = vmatmul.f32.gmra.mxu0 %v332
    %v354 = vpop.f32.mrf.mxu0
    %v355 = vadd.f32 0.0, %v354
    %356 = vdwg.mxu0
    %v357 = vpack.c.bf16 %v355, %v352
    %359 = vrot.lane.b32.xlu0 %v357, 96
    %v360 = vpop.permute.xlu0 %359
    %362 = vmatpush.bf16.msra.mxu0 0
    %363 = vmatpush.bf16.msra.mxu0 0
    %364 = vmatpush.bf16.msra.mxu0 0
    %365 = vmatpush.bf16.msra.mxu0 0
    %366 = vmatpush.bf16.msra.mxu0 0
    %367 = vmatpush.bf16.msra.mxu0 0
    %368 = vmatpush.bf16.msra.mxu0 0
    %369 = vmatpush.bf16.msra.mxu0 %v360
    %370 = vmatmul.bf16.gmra.mxu0 %v170
    %v371 = vpop.f32.mrf.mxu0
    %v372 = vadd.f32 0.0, %v371
    %v373 = vpop.f32.mrf.mxu0
    %v374 = vadd.f32 0.0, %v373
    %375 = vdwg.mxu0
    %v376 = vadd.f32 %v352, %v372
    %v377 = vadd.f32 %v355, %v374
    %s378 = scalar_lea.vmem [#allocation10], 2
    %v379 = vld [vmem:[%s378] sm:$0x1]
    %v381 = vperm.slane %v379, 0
    %v383 = vadd.f32 %v376, %v381
    %v384 = vadd.f32 %v377, %v381
    %v385 = vmax.f32 %v383, 0.0
    %v386 = vmax.f32 %v384, 0.0
    %s387 = scalar_lea.vmem [#allocation8], 96
    %v388 = vld [vmem:[%s387] sm:$0xff]
    %v389 = vld [vmem:[%s387 + $0x8] sm:$0xff]
    %v390 = vld [vmem:[%s387 + $0x10] sm:$0xff]
    %v391 = vld [vmem:[%s387 + $0x18] sm:$0xff]
    %v393 = vsel %vm200, %v385, 0
    %v396 = vsel %vm200, %v386, 0
    %398 = vmatpush.msra.mxu0 0.0
    %399 = vmatpush.msra.mxu0 0.0
    %400 = vmatpush.msra.mxu0 0.0
    %401 = vmatpush.msra.mxu0 0.0
    %402 = vmatpush.msra.mxu0 0.0
    %403 = vmatpush.msra.mxu0 0.0
    %404 = vmatpush.msra.mxu0 0.0
    %405 = vmatpush.msra.mxu0 0.0
    %406 = vmatpush.msra.mxu0 0.0
    %407 = vmatpush.msra.mxu0 0.0
    %408 = vmatpush.msra.mxu0 0.0
    %409 = vmatpush.msra.mxu0 0.0
    %410 = vmatpush.msra.mxu0 %v391
    %411 = vmatpush.msra.mxu0 %v390
    %412 = vmatpush.msra.mxu0 %v389
    %413 = vmatpush.msra.mxu0 %v388
    %414 = vmatmul.f32.gmra.mxu0 %v393
    %v415 = vpop.f32.mrf.mxu0
    %v416 = vadd.f32 0.0, %v415
    %417 = vmatmul.f32.gmra.mxu0 %v396
    %v418 = vpop.f32.mrf.mxu0
    %v419 = vadd.f32 0.0, %v418
    %420 = vdwg.mxu0
    %v421 = vpack.c.bf16 %v419, %v416
    %423 = vrot.lane.b32.xlu0 %v421, 96
    %v424 = vpop.permute.xlu0 %423
    %426 = vmatpush.bf16.msra.mxu0 0
    %427 = vmatpush.bf16.msra.mxu0 0
    %428 = vmatpush.bf16.msra.mxu0 0
    %429 = vmatpush.bf16.msra.mxu0 0
    %430 = vmatpush.bf16.msra.mxu0 0
    %431 = vmatpush.bf16.msra.mxu0 0
    %432 = vmatpush.bf16.msra.mxu0 0
    %433 = vmatpush.bf16.msra.mxu0 %v424
    %434 = vmatmul.bf16.gmra.mxu0 %v170
    %v435 = vpop.f32.mrf.mxu0
    %v436 = vadd.f32 0.0, %v435
    %v437 = vpop.f32.mrf.mxu0
    %v438 = vadd.f32 0.0, %v437
    %439 = vdwg.mxu0
    %v440 = vadd.f32 %v416, %v436
    %v441 = vadd.f32 %v419, %v438
    %s442 = scalar_lea.vmem [#allocation10], 3
    %v443 = vld [vmem:[%s442] sm:$0x1]
    %v445 = vperm.slane %v443, 0
    %v447 = vadd.f32 %v440, %v445
    %v448 = vadd.f32 %v441, %v445
    %v449 = vmax.f32 %v447, 0.0
    %v450 = vmax.f32 %v448, 0.0
    %v451 = vld [vmem:[%s2] sm:$0x3]
    %v453 = vsel %vm168, %v451, 0
    %455 = vmatpush.msra.mxu0 0.0
    %456 = vmatpush.msra.mxu0 0.0
    %457 = vmatpush.msra.mxu0 0.0
    %458 = vmatpush.msra.mxu0 0.0
    %459 = vmatpush.msra.mxu0 0.0
    %460 = vmatpush.msra.mxu0 0.0
    %461 = vmatpush.msra.mxu0 0.0
    %462 = vmatpush.msra.mxu0 0.0
    %463 = vmatpush.msra.mxu0 0.0
    %464 = vmatpush.msra.mxu0 0.0
    %465 = vmatpush.msra.mxu0 0.0
    %466 = vmatpush.msra.mxu0 0.0
    %467 = vmatpush.msra.mxu0 0.0
    %468 = vmatpush.msra.mxu0 0.0
    %469 = vmatpush.msra.mxu0 %v450
    %470 = vmatpush.msra.mxu0 %v449
    %471 = vmatmul.f32.gmra.mxu0 %v453
    %v472 = vpop.f32.mrf.mxu0
    %v473 = vadd.f32 0.0, %v472
    %474 = vdwg.mxu0
    %v475 = vld [vmem:[%s7] sm:$0xff]
    %v476 = vld [vmem:[%s7 + $0x8] sm:$0xff]
    %v477 = vld [vmem:[%s7 + $0x10] sm:$0xff]
    %v478 = vld [vmem:[%s7 + $0x18] sm:$0xff]
    %v479 = vld [vmem:[%s8] sm:$0x1]
    %v481 = vperm.slane %v479, 0
    %v484 = vsel %vm200, %v473, 0
    %486 = vmatpush.msra.mxu0 0.0
    %487 = vmatpush.msra.mxu0 0.0
    %488 = vmatpush.msra.mxu0 0.0
    %489 = vmatpush.msra.mxu0 0.0
    %490 = vmatpush.msra.mxu0 0.0
    %491 = vmatpush.msra.mxu0 0.0
    %492 = vmatpush.msra.mxu0 0.0
    %493 = vmatpush.msra.mxu0 0.0
    %494 = vmatpush.msra.mxu0 0.0
    %495 = vmatpush.msra.mxu0 0.0
    %496 = vmatpush.msra.mxu0 0.0
    %497 = vmatpush.msra.mxu0 0.0
    %498 = vmatpush.msra.mxu0 %v478
    %499 = vmatpush.msra.mxu0 %v477
    %500 = vmatpush.msra.mxu0 %v476
    %501 = vmatpush.msra.mxu0 %v475
    %502 = vmatmul.f32.gmra.mxu0 %v484
    %v503 = vpop.f32.mrf.mxu0
    %v504 = vadd.f32 %v481, %v503
    %505 = vdwg.mxu0
    %v506 = vmax.f32 %v504, 0.0
    %v507 = vld [vmem:[%s9] sm:$0xff]
    %v508 = vld [vmem:[%s9 + $0x8] sm:$0xff]
    %v509 = vld [vmem:[%s9 + $0x10] sm:$0xff]
    %v510 = vld [vmem:[%s9 + $0x18] sm:$0xff]
    %v511 = vld [vmem:[%s10] sm:$0x1]
    %v513 = vperm.slane %v511, 0
    %v516 = vsel %vm200, %v506, 0
    %518 = vmatpush.msra.mxu0 0.0
    %519 = vmatpush.msra.mxu0 0.0
    %520 = vmatpush.msra.mxu0 0.0
    %521 = vmatpush.msra.mxu0 0.0
    %522 = vmatpush.msra.mxu0 0.0
    %523 = vmatpush.msra.mxu0 0.0
    %524 = vmatpush.msra.mxu0 0.0
    %525 = vmatpush.msra.mxu0 0.0
    %526 = vmatpush.msra.mxu0 0.0
    %527 = vmatpush.msra.mxu0 0.0
    %528 = vmatpush.msra.mxu0 0.0
    %529 = vmatpush.msra.mxu0 0.0
    %530 = vmatpush.msra.mxu0 %v510
    %531 = vmatpush.msra.mxu0 %v509
    %532 = vmatpush.msra.mxu0 %v508
    %533 = vmatpush.msra.mxu0 %v507
    %534 = vmatmul.f32.gmra.mxu0 %v516
    %v535 = vpop.f32.mrf.mxu0
    %v536 = vadd.f32 %v513, %v535
    %537 = vdwg.mxu0
    %539 = vrot.lane.b32.xlu0 %v536, 1
    %v540 = vpop.permute.xlu0 %539
    %v542 = vsub.f32 %v536, %v540
    %v543 = vmax.f32 %v542, 0.0
    %v544 = vand.u32 2147483647, %v542
    %v545 = vsub.f32 0.0, %v544
    %v546 = vmul.f32 %v545, 1.442695
    %v547 = vpow.pop %v546
    %v548 = vadd.f32 %v547, 1.0
    %v549 = vlog2.pop %v548
    %v550 = vmul.f32 %v549, 0.6931472
    %v551 = vmul.f32 -0.5, %v547
    %v552 = vadd.f32 %v551, 1.0
    %v553 = vmul.f32 %v552, %v547
    %v554 = vand.u32 2147483647, %v547
    %vm555 = vcmp.lt.f32.partialorder %v554, 0.0004427343
    %v556 = vsel %vm555, %v553, %v550
    %v557 = vadd.f32 %v543, %v556
    %559 = vrot.lane.b32.xlu0 %v557, 127
    %v560 = vpop.permute.xlu0 %559
    %v562 = vadd.f32 %v536, %v560
    %564 = vset.pattern.permute.xlu0 0
    %565 = vperm.xlu0 %564, %v562
    %v566 = vpop.permute.xlu0 %565
    %v568 = vsub.f32 %v536, %v566
    %vm569 = vcmask 9216
    %570 = vst.msk [vmem:[#allocation11] sm:$0x3] %vm569, %v568
    // Predicated region
    $region66: #{tpu_custom_call.1} parent=1 // pred_check
      _
    $region67: #{tpu_custom_call.1} parent=1 // pred_check_branch
      %572 = sbr.rel (0) target = $region69
    $region68: #{tpu_custom_call.1} parent=1 // pred_region
      %574 = vsyncadd [#allocation4], 0
      %s576 = sshll.u32 [#allocation11], 4
      %s577 = int_to_ptr.vmem [resolvable:$true] %s576
      %s578 = sshll.u32 %s11, 4
      %s579 = int_to_ptr.hbm [resolvable:$true] %s578
      %581 = dma.vmem_to_hbm [thread:$0]  %s577, 32, %s579, [#allocation4]
    $region69: #{tpu_custom_call.1} parent=1 // pred_fallthru
      _
    // Predicated region
    $region70: #{tpu_custom_call.1} parent=1 // pred_check
      _
    $region71: #{tpu_custom_call.1} parent=1 // pred_check_branch
      %583 = sbr.rel (0) target = $region73
    $region72: #{tpu_custom_call.1} parent=1 // pred_region
      %585 = dma.done [#allocation4], 32
    $region73: #{tpu_custom_call.1} parent=1 // pred_fallthru
      _
    %586 = vsyncpa [#allocation3], 1
    %587 = vsyncpa [#allocation6], 1
    %588 = vsyncpa [#allocation9], 1
    %589 = vsyncpa [#allocation4], 1

</llo_original>
